<compile_context>
chip_gen: v5e
topology: v5e:2x2
jax: 0.10.0
libtpu: 0.0.40
codegen_flags: <defaults>
</compile_context>

<pallas_src>
import jax
import jax.numpy as jnp
from jax.experimental import pallas as pl
from jax.experimental.pallas import tpu as pltpu


def twin_critic_kernel(
    s_ref, a_ref,                       # [TB, Ds], [TB, Da]
    w1s_ref, w1a_ref, b1_ref,           # [Ds, 2H], [Da, 2H], [1, 2H]  (both heads fused)
    w2a_ref, b2a_ref,                   # [H, H], [1, H]   (Q1 layer 2)
    w2b_ref, b2b_ref,                   # [H, H], [1, H]   (Q2 layer 2)
    w3_ref, b3_ref,                     # [2H, 2], [1, 2]  (block-diag, both heads fused)
    q_ref,                              # [TB, 2]  -> (q1 | q2)
):
    H = w2a_ref.shape[0]

    s = s_ref[...].astype(jnp.bfloat16)
    a = a_ref[...].astype(jnp.bfloat16)

    # Layer 1 (both heads fused along the output/lane dim): [TB, 2H].
    h1 = (
        jnp.dot(s, w1s_ref[...], preferred_element_type=jnp.float32)
        + jnp.dot(a, w1a_ref[...], preferred_element_type=jnp.float32)
        + b1_ref[...]
    )
    h1 = jnp.maximum(h1, 0.0)

    # Layer 2, per head (each matmul is naturally MXU-shaped at H=256).
    h1a = h1[:, :H].astype(jnp.bfloat16)
    h1b = h1[:, H:].astype(jnp.bfloat16)
    h2a = jnp.maximum(
        jnp.dot(h1a, w2a_ref[...], preferred_element_type=jnp.float32) + b2a_ref[...],
        0.0,
    )
    h2b = jnp.maximum(
        jnp.dot(h1b, w2b_ref[...], preferred_element_type=jnp.float32) + b2b_ref[...],
        0.0,
    )

    # Layer 3: one block-diagonal matmul -> lane-dense [TB, 2] output.
    h2 = jnp.concatenate([h2a, h2b], axis=1).astype(jnp.bfloat16)
    q = jnp.dot(h2, w3_ref[...], preferred_element_type=jnp.float32) + b3_ref[...]
    q_ref[...] = q.astype(q_ref.dtype)


def twin_critic_forward(state, action, params, *, max_tile_b=1024):
    """state: [B, Ds], action: [B, Da] -> (Q1, Q2), each [B, 1]."""
    B, Ds = state.shape
    Da = action.shape[1]
    p1, p2 = params["q1"], params["q2"]
    H = p1["w2"].shape[0]
    wdt = jnp.bfloat16

    # ---- weight prep (tiny; would be pre-fused once in a real training loop) ----
    # Layer 1: split by input (concat folded into the kernel), fuse heads on output.
    w1s = jnp.concatenate([p1["w1"][:Ds], p2["w1"][:Ds]], axis=1).astype(wdt)  # [Ds, 2H]
    w1a = jnp.concatenate([p1["w1"][Ds:], p2["w1"][Ds:]], axis=1).astype(wdt)  # [Da, 2H]
    b1 = jnp.concatenate([p1["b1"], p2["b1"]], axis=1).astype(jnp.float32)     # [1, 2H]
    w2a = p1["w2"].astype(wdt)
    b2a = p1["b2"].astype(jnp.float32)
    w2b = p2["w2"].astype(wdt)
    b2b = p2["b2"].astype(jnp.float32)
    # Layer 3: block-diagonal [2H, 2] so one matmul emits [q1 | q2].
    w3 = jnp.zeros((2 * H, 2), wdt)
    w3 = w3.at[:H, 0:1].set(p1["w3"].astype(wdt))
    w3 = w3.at[H:, 1:2].set(p2["w3"].astype(wdt))
    b3 = jnp.concatenate([p1["b3"], p2["b3"]], axis=1).astype(jnp.float32)     # [1, 2]

    # ---- batch tiling (weights stay resident; activations double-buffered) ----
    if B <= max_tile_b:
        tile_b, padded_b = B, B
    else:
        tile_b = max_tile_b                     # multiple of 8, fits well under 32 MiB VMEM
        padded_b = pl.cdiv(B, tile_b) * tile_b
    if padded_b != B:
        pad = padded_b - B
        state = jnp.pad(state, ((0, pad), (0, 0)))
        action = jnp.pad(action, ((0, pad), (0, 0)))
    num_tiles = padded_b // tile_b

    def act_spec(d):
        return pl.BlockSpec((tile_b, d), lambda i: (i, 0))

    def resident(arr):
        return pl.BlockSpec(arr.shape, lambda i: (0, 0))

    in_specs = [
        act_spec(Ds), act_spec(Da),
        resident(w1s), resident(w1a), resident(b1),
        resident(w2a), resident(b2a),
        resident(w2b), resident(b2b),
        resident(w3), resident(b3),
    ]
    out_spec = pl.BlockSpec((tile_b, 2), lambda i: (i, 0))

    flops = 2 * padded_b * ((Ds + Da) * 2 * H + 2 * H * H + 2 * H * 2)
    bytes_accessed = (
        padded_b * (Ds + Da) * 4                                            # activations (f32)
        + padded_b * 2 * 4                                                  # q out (f32)
        + (w1s.size + w1a.size + w2a.size + w2b.size + w3.size) * 2         # bf16 weights
        + (b1.size + b2a.size + b2b.size + b3.size) * 4                     # f32 biases
    )

    q = pl.pallas_call(
        twin_critic_kernel,
        out_shape=jax.ShapeDtypeStruct((padded_b, 2), jnp.float32),
        grid=(num_tiles,),
        in_specs=in_specs,
        out_specs=out_spec,
        compiler_params=pltpu.CompilerParams(
            dimension_semantics=("parallel",),
        ),
        cost_estimate=pl.CostEstimate(
            flops=flops, transcendentals=0, bytes_accessed=bytes_accessed
        ),
    )(state, action, w1s, w1a, b1, w2a, b2a, w2b, b2b, w3, b3)

    q = q[:B]
    return q[:, 0:1], q[:, 1:2]


def init_params(key, state_dim, action_dim, hidden_dim):
    """nn.Linear-style init (uniform +/- 1/sqrt(fan_in)); W as [in, out]."""
    in_dim = state_dim + action_dim

    def linear(key, fan_in, fan_out):
        kw, kb = jax.random.split(key)
        bound = 1.0 / jnp.sqrt(fan_in)
        w = jax.random.uniform(kw, (fan_in, fan_out), jnp.float32, -bound, bound)
        b = jax.random.uniform(kb, (1, fan_out), jnp.float32, -bound, bound)
        return w, b

    keys = jax.random.split(key, 6)
    w1a, b1a = linear(keys[0], in_dim, hidden_dim)
    w2a, b2a = linear(keys[1], hidden_dim, hidden_dim)
    w3a, b3a = linear(keys[2], hidden_dim, 1)
    w1b, b1b = linear(keys[3], in_dim, hidden_dim)
    w2b, b2b = linear(keys[4], hidden_dim, hidden_dim)
    w3b, b3b = linear(keys[5], hidden_dim, 1)
    return {
        "q1": {"w1": w1a, "b1": b1a, "w2": w2a, "b2": b2a, "w3": w3a, "b3": b3a},
        "q2": {"w1": w1b, "b1": b1b, "w2": w2b, "b2": b2b, "w3": w3b, "b3": b3b},
    }


def reference_forward(state, action, params, *, bf16_matmul=False):
    """Pure-JAX reference matching the PyTorch semantics (optionally bf16 MXU ops)."""
    x = jnp.concatenate([state, action], axis=1)

    def cast(v):
        return v.astype(jnp.bfloat16) if bf16_matmul else v

    def mlp(p):
        h = jax.nn.relu(
            jnp.dot(cast(x), cast(p["w1"]), preferred_element_type=jnp.float32) + p["b1"]
        )
        h = jax.nn.relu(
            jnp.dot(cast(h), cast(p["w2"]), preferred_element_type=jnp.float32) + p["b2"]
        )
        return jnp.dot(cast(h), cast(p["w3"]), preferred_element_type=jnp.float32) + p["b3"]

    return mlp(params["q1"]), mlp(params["q2"])


if __name__ == "__main__":
    B, state_dim, action_dim, hidden_dim = 8, 16, 8, 32

    key = jax.random.PRNGKey(0)
    k_state, k_action, k_params = jax.random.split(key, 3)
    state = jax.random.normal(k_state, (B, state_dim), jnp.float32)
    action = jax.random.normal(k_action, (B, action_dim), jnp.float32)
    params = init_params(k_params, state_dim, action_dim, hidden_dim)

    q1, q2 = twin_critic_forward(state, action, params)
    jax.block_until_ready((q1, q2))

    # Tight check against a bf16-matmul reference (same MXU dtype as the kernel).
    q1_bf, q2_bf = reference_forward(state, action, params, bf16_matmul=True)
    # Looser sanity check against the pure-f32 reference (bf16 weight rounding).
    q1_f32, q2_f32 = reference_forward(state, action, params, bf16_matmul=False)

    assert q1.shape == (B, 1) and q2.shape == (B, 1)
    assert jnp.allclose(q1, q1_bf, atol=1e-4, rtol=1e-4)
    assert jnp.allclose(q2, q2_bf, atol=1e-4, rtol=1e-4)
    assert jnp.allclose(q1, q1_f32, atol=5e-2, rtol=5e-2)
    assert jnp.allclose(q2, q2_f32, atol=5e-2, rtol=5e-2)

    print("KERNEL_OK")
</pallas_src>

<mosaic_0001>
module attributes {stable_mosaic.version = 11 : i64} {
  func.func @twin_critic_kernel(%arg0: i32, %arg1: memref<8x16xf32, #tpu.memory_space<vmem>>, %arg2: memref<8x8xf32, #tpu.memory_space<vmem>>, %arg3: memref<16x64xbf16, #tpu.memory_space<vmem>>, %arg4: memref<8x64xbf16, #tpu.memory_space<vmem>>, %arg5: memref<1x64xf32, #tpu.memory_space<vmem>>, %arg6: memref<32x32xbf16, #tpu.memory_space<vmem>>, %arg7: memref<1x32xf32, #tpu.memory_space<vmem>>, %arg8: memref<32x32xbf16, #tpu.memory_space<vmem>>, %arg9: memref<1x32xf32, #tpu.memory_space<vmem>>, %arg10: memref<64x2xbf16, #tpu.memory_space<vmem>>, %arg11: memref<1x2xf32, #tpu.memory_space<vmem>>, %arg12: memref<8x2xf32, #tpu.memory_space<vmem>>) attributes {dimension_semantics = [#tpu.dimension_semantics<parallel>], iteration_bounds = array<i64: 1>, scalar_prefetch = 0 : i64, scratch_operands = 0 : i64, tpu.core_type = #tpu.core_type<tc>, window_params = [{transform_indices = @transform_0, window_bounds = array<i64: 8, 16>}, {transform_indices = @transform_1, window_bounds = array<i64: 8, 8>}, {pipeline_mode = #tpu.pipeline_mode<synchronous>, transform_indices = @transform_2, window_bounds = array<i64: 16, 64>}, {pipeline_mode = #tpu.pipeline_mode<synchronous>, transform_indices = @transform_3, window_bounds = array<i64: 8, 64>}, {pipeline_mode = #tpu.pipeline_mode<synchronous>, transform_indices = @transform_4, window_bounds = array<i64: 1, 64>}, {pipeline_mode = #tpu.pipeline_mode<synchronous>, transform_indices = @transform_5, window_bounds = array<i64: 32, 32>}, {pipeline_mode = #tpu.pipeline_mode<synchronous>, transform_indices = @transform_6, window_bounds = array<i64: 1, 32>}, {pipeline_mode = #tpu.pipeline_mode<synchronous>, transform_indices = @transform_7, window_bounds = array<i64: 32, 32>}, {pipeline_mode = #tpu.pipeline_mode<synchronous>, transform_indices = @transform_8, window_bounds = array<i64: 1, 32>}, {pipeline_mode = #tpu.pipeline_mode<synchronous>, transform_indices = @transform_9, window_bounds = array<i64: 64, 2>}, {pipeline_mode = #tpu.pipeline_mode<synchronous>, transform_indices = @transform_10, window_bounds = array<i64: 1, 2>}, {transform_indices = @transform_11, window_bounds = array<i64: 8, 2>}]} {
    %c0 = arith.constant 0 : index
    %c0_0 = arith.constant 0 : index
    %0 = vector.load %arg1[%c0, %c0_0] : memref<8x16xf32, #tpu.memory_space<vmem>>, vector<8x16xf32>
    %1 = arith.truncf %0 : vector<8x16xf32> to vector<8x16xbf16>
    %c0_1 = arith.constant 0 : index
    %c0_2 = arith.constant 0 : index
    %2 = vector.load %arg2[%c0_1, %c0_2] : memref<8x8xf32, #tpu.memory_space<vmem>>, vector<8x8xf32>
    %3 = arith.truncf %2 : vector<8x8xf32> to vector<8x8xbf16>
    %c0_3 = arith.constant 0 : index
    %c0_4 = arith.constant 0 : index
    %4 = vector.load %arg3[%c0_3, %c0_4] : memref<16x64xbf16, #tpu.memory_space<vmem>>, vector<16x64xbf16>
    %cst = arith.constant dense<0.000000e+00> : vector<8x64xf32>
    %5 = tpu.matmul %1, %4, %cst {dimension_numbers = #tpu.dot_dimension_numbers<[1], [0], [0], [1], [0, 0, 1, 1], [], []>} : vector<8x16xbf16>, vector<16x64xbf16>, vector<8x64xf32> -> vector<8x64xf32>
    %c0_5 = arith.constant 0 : index
    %c0_6 = arith.constant 0 : index
    %6 = vector.load %arg4[%c0_5, %c0_6] : memref<8x64xbf16, #tpu.memory_space<vmem>>, vector<8x64xbf16>
    %cst_7 = arith.constant dense<0.000000e+00> : vector<8x64xf32>
    %7 = tpu.matmul %3, %6, %cst_7 {dimension_numbers = #tpu.dot_dimension_numbers<[1], [0], [0], [1], [0, 0, 1, 1], [], []>} : vector<8x8xbf16>, vector<8x64xbf16>, vector<8x64xf32> -> vector<8x64xf32>
    %8 = arith.addf %5, %7 : vector<8x64xf32>
    %c0_8 = arith.constant 0 : index
    %c0_9 = arith.constant 0 : index
    %9 = vector.load %arg5[%c0_8, %c0_9] : memref<1x64xf32, #tpu.memory_space<vmem>>, vector<1x64xf32>
    %10 = vector.broadcast %9 : vector<1x64xf32> to vector<8x64xf32>
    %11 = arith.addf %8, %10 : vector<8x64xf32>
    %cst_10 = arith.constant 0.000000e+00 : f32
    %12 = vector.broadcast %cst_10 : f32 to vector<8x64xf32>
    %13 = arith.maximumf %11, %12 : vector<8x64xf32>
    %14 = vector.extract_strided_slice %13 {offsets = [0, 0], sizes = [8, 32], strides = [1, 1]} : vector<8x64xf32> to vector<8x32xf32>
    %15 = arith.truncf %14 : vector<8x32xf32> to vector<8x32xbf16>
    %16 = vector.extract_strided_slice %13 {offsets = [0, 32], sizes = [8, 32], strides = [1, 1]} : vector<8x64xf32> to vector<8x32xf32>
    %17 = arith.truncf %16 : vector<8x32xf32> to vector<8x32xbf16>
    %c0_11 = arith.constant 0 : index
    %c0_12 = arith.constant 0 : index
    %18 = vector.load %arg6[%c0_11, %c0_12] : memref<32x32xbf16, #tpu.memory_space<vmem>>, vector<32x32xbf16>
    %cst_13 = arith.constant dense<0.000000e+00> : vector<8x32xf32>
    %19 = tpu.matmul %15, %18, %cst_13 {dimension_numbers = #tpu.dot_dimension_numbers<[1], [0], [0], [1], [0, 0, 1, 1], [], []>} : vector<8x32xbf16>, vector<32x32xbf16>, vector<8x32xf32> -> vector<8x32xf32>
    %c0_14 = arith.constant 0 : index
    %c0_15 = arith.constant 0 : index
    %20 = vector.load %arg7[%c0_14, %c0_15] : memref<1x32xf32, #tpu.memory_space<vmem>>, vector<1x32xf32>
    %21 = vector.broadcast %20 : vector<1x32xf32> to vector<8x32xf32>
    %22 = arith.addf %19, %21 : vector<8x32xf32>
    %cst_16 = arith.constant 0.000000e+00 : f32
    %23 = vector.broadcast %cst_16 : f32 to vector<8x32xf32>
    %24 = arith.maximumf %22, %23 : vector<8x32xf32>
    %c0_17 = arith.constant 0 : index
    %c0_18 = arith.constant 0 : index
    %25 = vector.load %arg8[%c0_17, %c0_18] : memref<32x32xbf16, #tpu.memory_space<vmem>>, vector<32x32xbf16>
    %cst_19 = arith.constant dense<0.000000e+00> : vector<8x32xf32>
    %26 = tpu.matmul %17, %25, %cst_19 {dimension_numbers = #tpu.dot_dimension_numbers<[1], [0], [0], [1], [0, 0, 1, 1], [], []>} : vector<8x32xbf16>, vector<32x32xbf16>, vector<8x32xf32> -> vector<8x32xf32>
    %c0_20 = arith.constant 0 : index
    %c0_21 = arith.constant 0 : index
    %27 = vector.load %arg9[%c0_20, %c0_21] : memref<1x32xf32, #tpu.memory_space<vmem>>, vector<1x32xf32>
    %28 = vector.broadcast %27 : vector<1x32xf32> to vector<8x32xf32>
    %29 = arith.addf %26, %28 : vector<8x32xf32>
    %cst_22 = arith.constant 0.000000e+00 : f32
    %30 = vector.broadcast %cst_22 : f32 to vector<8x32xf32>
    %31 = arith.maximumf %29, %30 : vector<8x32xf32>
    %32 = tpu.concatenate %24, %31 in 1 : vector<8x32xf32>, vector<8x32xf32> -> vector<8x64xf32>
    %33 = arith.truncf %32 : vector<8x64xf32> to vector<8x64xbf16>
    %c0_23 = arith.constant 0 : index
    %c0_24 = arith.constant 0 : index
    %34 = vector.load %arg10[%c0_23, %c0_24] : memref<64x2xbf16, #tpu.memory_space<vmem>>, vector<64x2xbf16>
    %cst_25 = arith.constant dense<0.000000e+00> : vector<8x2xf32>
    %35 = tpu.matmul %33, %34, %cst_25 {dimension_numbers = #tpu.dot_dimension_numbers<[1], [0], [0], [1], [0, 0, 1, 1], [], []>} : vector<8x64xbf16>, vector<64x2xbf16>, vector<8x2xf32> -> vector<8x2xf32>
    %c0_26 = arith.constant 0 : index
    %c0_27 = arith.constant 0 : index
    %36 = vector.load %arg11[%c0_26, %c0_27] : memref<1x2xf32, #tpu.memory_space<vmem>>, vector<1x2xf32>
    %37 = vector.broadcast %36 : vector<1x2xf32> to vector<8x2xf32>
    %38 = arith.addf %35, %37 : vector<8x2xf32>
    %c0_28 = arith.constant 0 : index
    %c0_29 = arith.constant 0 : index
    %39 = vector.load %arg12[%c0_28, %c0_29] : memref<8x2xf32, #tpu.memory_space<vmem>>, vector<8x2xf32>
    tpu.vector_store %arg12[%c0_28, %c0_29], %38 {strides = array<i32>} : memref<8x2xf32, #tpu.memory_space<vmem>>, vector<8x2xf32>,
    return
  }
  func.func @transform_0(%arg0: i32) -> (i32, i32) {
    %c0_i32 = arith.constant 0 : i32
    %c0_i32_0 = arith.constant 0 : i32
    return %arg0, %c0_i32 : i32, i32
  }
  func.func @transform_1(%arg0: i32) -> (i32, i32) {
    %c0_i32 = arith.constant 0 : i32
    %c0_i32_0 = arith.constant 0 : i32
    return %arg0, %c0_i32 : i32, i32
  }
  func.func @transform_2(%arg0: i32) -> (i32, i32) {
    %c0_i32 = arith.constant 0 : i32
    %c0_i32_0 = arith.constant 0 : i32
    %c0_i32_1 = arith.constant 0 : i32
    return %c0_i32, %c0_i32_0 : i32, i32
  }
  func.func @transform_3(%arg0: i32) -> (i32, i32) {
    %c0_i32 = arith.constant 0 : i32
    %c0_i32_0 = arith.constant 0 : i32
    %c0_i32_1 = arith.constant 0 : i32
    return %c0_i32, %c0_i32_0 : i32, i32
  }
  func.func @transform_4(%arg0: i32) -> (i32, i32) {
    %c0_i32 = arith.constant 0 : i32
    %c0_i32_0 = arith.constant 0 : i32
    %c0_i32_1 = arith.constant 0 : i32
    return %c0_i32, %c0_i32_0 : i32, i32
  }
  func.func @transform_5(%arg0: i32) -> (i32, i32) {
    %c0_i32 = arith.constant 0 : i32
    %c0_i32_0 = arith.constant 0 : i32
    %c0_i32_1 = arith.constant 0 : i32
    return %c0_i32, %c0_i32_0 : i32, i32
  }
  func.func @transform_6(%arg0: i32) -> (i32, i32) {
    %c0_i32 = arith.constant 0 : i32
    %c0_i32_0 = arith.constant 0 : i32
    %c0_i32_1 = arith.constant 0 : i32
    return %c0_i32, %c0_i32_0 : i32, i32
  }
  func.func @transform_7(%arg0: i32) -> (i32, i32) {
    %c0_i32 = arith.constant 0 : i32
    %c0_i32_0 = arith.constant 0 : i32
    %c0_i32_1 = arith.constant 0 : i32
    return %c0_i32, %c0_i32_0 : i32, i32
  }
  func.func @transform_8(%arg0: i32) -> (i32, i32) {
    %c0_i32 = arith.constant 0 : i32
    %c0_i32_0 = arith.constant 0 : i32
    %c0_i32_1 = arith.constant 0 : i32
    return %c0_i32, %c0_i32_0 : i32, i32
  }
  func.func @transform_9(%arg0: i32) -> (i32, i32) {
    %c0_i32 = arith.constant 0 : i32
    %c0_i32_0 = arith.constant 0 : i32
    %c0_i32_1 = arith.constant 0 : i32
    return %c0_i32, %c0_i32_0 : i32, i32
  }
  func.func @transform_10(%arg0: i32) -> (i32, i32) {
    %c0_i32 = arith.constant 0 : i32
    %c0_i32_0 = arith.constant 0 : i32
    %c0_i32_1 = arith.constant 0 : i32
    return %c0_i32, %c0_i32_0 : i32, i32
  }
  func.func @transform_11(%arg0: i32) -> (i32, i32) {
    %c0_i32 = arith.constant 0 : i32
    %c0_i32_0 = arith.constant 0 : i32
    return %arg0, %c0_i32 : i32, i32
  }
}

</mosaic_0001>

<llo_original>
// kernel: tpu_custom_call.1
$region0: #{tpu_custom_call.1}
  #allocation0 [shape = 'u32[]', space=smem, size = 0x4, offset = 0x4, fixed_abs, tag = 'smem constant byte address 0x4 - core index']
  #allocation1 [shape = 'u32[72,128]{1,0:T(1,128)}', space=vmem, size = 0x9000, scoped, tag = 'internal scratch']
  %s0 = inlined_call_operand.hbm [shape: f32[8,16], index: 0, kind: input, shape index: {}]
  %s1 = inlined_call_operand.hbm [shape: f32[8,8], index: 1, kind: input, shape index: {}]
  %s2 = inlined_call_operand.hbm [shape: bf16[16,64], index: 2, kind: input, shape index: {}]
  %s3 = inlined_call_operand.hbm [shape: bf16[8,64], index: 3, kind: input, shape index: {}]
  %s4 = inlined_call_operand.vmem [shape: f32[1,64], index: 4, kind: input, shape index: {}]
  %s5 = inlined_call_operand.vmem [shape: bf16[32,32], index: 5, kind: input, shape index: {}]
  %s6 = inlined_call_operand.vmem [shape: f32[1,32], index: 6, kind: input, shape index: {}]
  %s7 = inlined_call_operand.vmem [shape: bf16[32,32], index: 7, kind: input, shape index: {}]
  %s8 = inlined_call_operand.vmem [shape: f32[1,32], index: 8, kind: input, shape index: {}]
  %s9 = inlined_call_operand.vmem [shape: bf16[64,2], index: 9, kind: input, shape index: {}]
  %s10 = inlined_call_operand.vmem [shape: f32[1,2], index: 10, kind: input, shape index: {}]
  %s11 = inlined_call_operand.vmem [shape: f32[8,2], index: 11, kind: output, shape index: {}]
  %s12 = sld [smem:[#allocation0]]
  $region70: #{tpu_custom_call.1} parent=0
    _
  %s14 = ssub.s32 1, %s12
  %s15 = scalar_select 0, %s14, %s12
  $region1: #{tpu_custom_call.1} parent=0
    #allocation2 [shape = 'u8[4096]{0}', space=vmem, size = 0x1000, scoped, tag = 'input window, operand 0, single buffered']
    #allocation3 [shape = 's32[1]{0}', space=sflag, size = 0x4, scoped, tag = 'scoped memory for tpu_custom_call.1']
    #allocation4 [shape = 'u8[4096]{0}', space=vmem, size = 0x1000, scoped, tag = 'input window, operand 1, single buffered']
    #allocation5 [shape = 's32[1]{0}', space=sflag, size = 0x4, scoped, tag = 'scoped memory for tpu_custom_call.1']
    #allocation6 [shape = 'u8[4096]{0}', space=vmem, size = 0x1000, scoped, tag = 'input window, operand 2, single buffered']
    #allocation7 [shape = 'u8[2048]{0}', space=vmem, size = 0x800, scoped, tag = 'input window, operand 3, single buffered']
    #allocation8 [shape = 's32[1]{0}', space=sflag, size = 0x4, scoped, tag = 'scoped memory for tpu_custom_call.1']
    %16 = vsyncpa [#allocation3], 0
    %17 = vsyncpa [#allocation5], 0
    %18 = vsyncpa [#allocation8], 0
    // Predicated region
    $region2: #{tpu_custom_call.1} parent=1 // pred_check
      _
    $region3: #{tpu_custom_call.1} parent=1 // pred_check_branch
      %20 = sbr.rel (0) target = $region5
    $region4: #{tpu_custom_call.1} parent=1 // pred_region
      %22 = vsyncadd [#allocation3], 0
      %s24 = sshll.u32 %s0, 4
      %s25 = int_to_ptr.hbm [resolvable:$true] %s24
      %s26 = sshll.u32 [#allocation2], 4
      %s27 = int_to_ptr.vmem [resolvable:$true] %s26
      %29 = dma.hbm_to_vmem [thread:$0]  %s25, 128, %s27, [#allocation3]
    $region5: #{tpu_custom_call.1} parent=1 // pred_fallthru
      _
    // Predicated region
    $region6: #{tpu_custom_call.1} parent=1 // pred_check
      _
    $region7: #{tpu_custom_call.1} parent=1 // pred_check_branch
      %31 = sbr.rel (0) target = $region9
    $region8: #{tpu_custom_call.1} parent=1 // pred_region
      %33 = vsyncadd [#allocation5], 0
      %s35 = sshll.u32 %s1, 4
      %s36 = int_to_ptr.hbm [resolvable:$true] %s35
      %s37 = sshll.u32 [#allocation4], 4
      %s38 = int_to_ptr.vmem [resolvable:$true] %s37
      %40 = dma.hbm_to_vmem [thread:$0]  %s36, 128, %s38, [#allocation5]
    $region9: #{tpu_custom_call.1} parent=1 // pred_fallthru
      _
    // Predicated region
    $region10: #{tpu_custom_call.1} parent=1 // pred_check
      _
    $region11: #{tpu_custom_call.1} parent=1 // pred_check_branch
      %42 = sbr.rel (0) target = $region13
    $region12: #{tpu_custom_call.1} parent=1 // pred_region
      %44 = vsyncadd [#allocation5], 0
      %s45 = sshll.u32 %s2, 4
      %s46 = int_to_ptr.hbm [resolvable:$true] %s45
      %s47 = sshll.u32 [#allocation6], 4
      %s48 = int_to_ptr.vmem [resolvable:$true] %s47
      %53 = dma.hbm_to_vmem [thread:$0]  %s46, 128, %s48, [#allocation5], 64, 64, 4
    $region13: #{tpu_custom_call.1} parent=1 // pred_fallthru
      _
    // Predicated region
    $region14: #{tpu_custom_call.1} parent=1 // pred_check
      _
    $region15: #{tpu_custom_call.1} parent=1 // pred_check_branch
      %55 = sbr.rel (0) target = $region17
    $region16: #{tpu_custom_call.1} parent=1 // pred_region
      %57 = vsyncadd [#allocation8], 0
      %s59 = sshll.u32 %s3, 4
      %s60 = int_to_ptr.hbm [resolvable:$true] %s59
      %s61 = sshll.u32 [#allocation7], 4
      %s62 = int_to_ptr.vmem [resolvable:$true] %s61
      %64 = dma.hbm_to_vmem [thread:$0]  %s60, 64, %s62, [#allocation8]
    $region17: #{tpu_custom_call.1} parent=1 // pred_fallthru
      _
    // Predicated region
    $region18: #{tpu_custom_call.1} parent=1 // pred_check
      _
    $region19: #{tpu_custom_call.1} parent=1 // pred_check_branch
      %66 = sbr.rel (0) target = $region21
    $region20: #{tpu_custom_call.1} parent=1 // pred_region
      _
    $region21: #{tpu_custom_call.1} parent=1 // pred_fallthru
      _
    // Predicated region
    $region22: #{tpu_custom_call.1} parent=1 // pred_check
      _
    $region23: #{tpu_custom_call.1} parent=1 // pred_check_branch
      %68 = sbr.rel (0) target = $region25
    $region24: #{tpu_custom_call.1} parent=1 // pred_region
      _
    $region25: #{tpu_custom_call.1} parent=1 // pred_fallthru
      _
    // Predicated region
    $region26: #{tpu_custom_call.1} parent=1 // pred_check
      _
    $region27: #{tpu_custom_call.1} parent=1 // pred_check_branch
      %70 = sbr.rel (0) target = $region29
    $region28: #{tpu_custom_call.1} parent=1 // pred_region
      _
    $region29: #{tpu_custom_call.1} parent=1 // pred_fallthru
      _
    // Predicated region
    $region30: #{tpu_custom_call.1} parent=1 // pred_check
      _
    $region31: #{tpu_custom_call.1} parent=1 // pred_check_branch
      %72 = sbr.rel (0) target = $region33
    $region32: #{tpu_custom_call.1} parent=1 // pred_region
      _
    $region33: #{tpu_custom_call.1} parent=1 // pred_fallthru
      _
    // Predicated region
    $region34: #{tpu_custom_call.1} parent=1 // pred_check
      _
    $region35: #{tpu_custom_call.1} parent=1 // pred_check_branch
      %74 = sbr.rel (0) target = $region37
    $region36: #{tpu_custom_call.1} parent=1 // pred_region
      _
    $region37: #{tpu_custom_call.1} parent=1 // pred_fallthru
      _
    // Predicated region
    $region38: #{tpu_custom_call.1} parent=1 // pred_check
      _
    $region39: #{tpu_custom_call.1} parent=1 // pred_check_branch
      %76 = sbr.rel (0) target = $region41
    $region40: #{tpu_custom_call.1} parent=1 // pred_region
      _
    $region41: #{tpu_custom_call.1} parent=1 // pred_fallthru
      _
    // Predicated region
    $region42: #{tpu_custom_call.1} parent=1 // pred_check
      _
    $region43: #{tpu_custom_call.1} parent=1 // pred_check_branch
      %78 = sbr.rel (0) target = $region45
    $region44: #{tpu_custom_call.1} parent=1 // pred_region
      _
    $region45: #{tpu_custom_call.1} parent=1 // pred_fallthru
      _
    // Predicated region
    $region46: #{tpu_custom_call.1} parent=1 // pred_check
      _
    $region47: #{tpu_custom_call.1} parent=1 // pred_check_branch
      %80 = sbr.rel (0) target = $region49
    $region48: #{tpu_custom_call.1} parent=1 // pred_region
      %82 = dma.done [#allocation3], 128
    $region49: #{tpu_custom_call.1} parent=1 // pred_fallthru
      _
    // Predicated region
    $region50: #{tpu_custom_call.1} parent=1 // pred_check
      _
    $region51: #{tpu_custom_call.1} parent=1 // pred_check_branch
      %84 = sbr.rel (0) target = $region53
    $region52: #{tpu_custom_call.1} parent=1 // pred_region
      %86 = dma.done [#allocation5], 128
    $region53: #{tpu_custom_call.1} parent=1 // pred_fallthru
      _
    // Predicated region
    $region54: #{tpu_custom_call.1} parent=1 // pred_check
      _
    $region55: #{tpu_custom_call.1} parent=1 // pred_check_branch
      %88 = sbr.rel (0) target = $region57
    $region56: #{tpu_custom_call.1} parent=1 // pred_region
      %90 = dma.done [#allocation5], 128
    $region57: #{tpu_custom_call.1} parent=1 // pred_fallthru
      _
    // Predicated region
    $region58: #{tpu_custom_call.1} parent=1 // pred_check
      _
    $region59: #{tpu_custom_call.1} parent=1 // pred_check_branch
      %92 = sbr.rel (0) target = $region61
    $region60: #{tpu_custom_call.1} parent=1 // pred_region
      %94 = dma.done [#allocation8], 64
    $region61: #{tpu_custom_call.1} parent=1 // pred_fallthru
      _
    %v96 = vld [vmem:[#allocation2] sm:$0xff]
    %v97 = vpack.c.bf16 %v96, %v96
    %v98 = vld [vmem:[#allocation4] sm:$0xff]
    %v99 = vpack.c.bf16 %v98, %v98
    %v100 = vld [vmem:[#allocation6] sm:$0xf]
    %v101 = vld [vmem:[#allocation6 + $0x4] sm:$0xf]
    %v102 = vld [vmem:[#allocation7] sm:$0xf]
    %vm103 = vcmask 64512
    %v105 = vsel %vm103, %v99, 0
    %vm107 = vcmask 1043456
    %v109 = vsel %vm107, %v102, 0
    %111 = vmatpush.bf16.msra.mxu0 0
    %112 = vmatpush.bf16.msra.mxu0 0
    %113 = vmatpush.bf16.msra.mxu0 0
    %114 = vmatpush.bf16.msra.mxu0 0
    %115 = vmatpush.bf16.msra.mxu0 0
    %116 = vmatpush.bf16.msra.mxu0 0
    %117 = vmatpush.bf16.msra.mxu0 0
    %118 = vmatpush.bf16.msra.mxu0 %v109
    %119 = vmatmul.bf16.gmra.mxu0 %v105
    %v120 = vpop.f32.mrf.mxu0
    %v121 = vadd.f32 0.0, %v120
    %v122 = vpop.f32.mrf.mxu0
    %123 = vdwg.mxu0
    %v126 = vunpack.c.l.b16 %v100
    %v127 = vunpack.c.l.b16 %v101
    %v128 = vpack.c.b16 %v127, %v126
    %vm130 = vcmask 130048
    %v132 = vsel %vm130, %v97, 0
    %134 = vmatpush.bf16.msra.mxu0 0
    %135 = vmatpush.bf16.msra.mxu0 0
    %136 = vmatpush.bf16.msra.mxu0 0
    %137 = vmatpush.bf16.msra.mxu0 0
    %138 = vmatpush.bf16.msra.mxu0 0
    %139 = vmatpush.bf16.msra.mxu0 0
    %140 = vmatpush.bf16.msra.mxu0 0
    %141 = vmatpush.bf16.msra.mxu0 %v128
    %142 = vmatmul.bf16.gmra.mxu0 %v132
    %v143 = vpop.f32.mrf.mxu0
    %v144 = vadd.f32 %v121, %v143
    %v145 = vpop.f32.mrf.mxu0
    %146 = vdwg.mxu0
    %v147 = vld [vmem:[%s4] sm:$0x1]
    %v149 = vperm.slane %v147, 0
    %v151 = vadd.f32 %v144, %v149
    %v152 = vmax.f32 %v151, 0.0
    %v153 = vpack.c.bf16 %v152, %v152
    %v154 = vld [vmem:[%s5] sm:$0xf]
    %v155 = vld [vmem:[%s5 + $0x4] sm:$0xf]
    %v156 = vld [vmem:[%s5 + $0x8] sm:$0xf]
    %v157 = vld [vmem:[%s5 + $0xc] sm:$0xf]
    %v158 = vld [vmem:[%s6] sm:$0x1]
    %v160 = vperm.slane %v158, 0
    %v166 = vunpack.c.l.b16 %v154
    %v167 = vunpack.c.l.b16 %v155
    %v168 = vunpack.c.l.b16 %v156
    %v169 = vunpack.c.l.b16 %v157
    %v170 = vpack.c.b16 %v167, %v166
    %v171 = vpack.c.b16 %v169, %v168
    %vm174 = vcmask 261120
    %v176 = vsel %vm174, %v153, 0
    %178 = vmatpush.bf16.msra.mxu0 0
    %179 = vmatpush.bf16.msra.mxu0 0
    %180 = vmatpush.bf16.msra.mxu0 0
    %181 = vmatpush.bf16.msra.mxu0 0
    %182 = vmatpush.bf16.msra.mxu0 0
    %183 = vmatpush.bf16.msra.mxu0 0
    %184 = vmatpush.bf16.msra.mxu0 %v171
    %185 = vmatpush.bf16.msra.mxu0 %v170
    %186 = vmatmul.bf16.gmra.mxu0 %v176
    %v187 = vpop.f32.mrf.mxu0
    %v188 = vadd.f32 %v160, %v187
    %v189 = vpop.f32.mrf.mxu0
    %190 = vdwg.mxu0
    %v191 = vmax.f32 %v188, 0.0
    %v192 = vld [vmem:[%s7] sm:$0xf]
    %v193 = vld [vmem:[%s7 + $0x4] sm:$0xf]
    %v194 = vld [vmem:[%s7 + $0x8] sm:$0xf]
    %v195 = vld [vmem:[%s7 + $0xc] sm:$0xf]
    %v196 = vld [vmem:[%s8] sm:$0x1]
    %v198 = vperm.slane %v196, 0
    %201 = vrot.lane.b32.xlu0 %v153, 96
    %v202 = vpop.permute.xlu0 %201
    %v207 = vunpack.c.l.b16 %v192
    %v208 = vunpack.c.l.b16 %v193
    %v209 = vunpack.c.l.b16 %v194
    %v210 = vunpack.c.l.b16 %v195
    %v211 = vpack.c.b16 %v208, %v207
    %v212 = vpack.c.b16 %v210, %v209
    %v216 = vsel %vm174, %v202, 0
    %218 = vmatpush.bf16.msra.mxu0 0
    %219 = vmatpush.bf16.msra.mxu0 0
    %220 = vmatpush.bf16.msra.mxu0 0
    %221 = vmatpush.bf16.msra.mxu0 0
    %222 = vmatpush.bf16.msra.mxu0 0
    %223 = vmatpush.bf16.msra.mxu0 0
    %224 = vmatpush.bf16.msra.mxu0 %v212
    %225 = vmatpush.bf16.msra.mxu0 %v211
    %226 = vmatmul.bf16.gmra.mxu0 %v216
    %v227 = vpop.f32.mrf.mxu0
    %v228 = vadd.f32 %v198, %v227
    %v229 = vpop.f32.mrf.mxu0
    %230 = vdwg.mxu0
    %v231 = vmax.f32 %v228, 0.0
    %233 = vrot.lane.b32.xlu0 %v231, 32
    %v234 = vpop.permute.xlu0 %233
    %v236 = vsel %vm174, %v191, %v234
    %v237 = vpack.c.bf16 %v236, %v236
    %v238 = vld [vmem:[%s9] sm:$0xf]
    %v239 = vld [vmem:[%s9 + $0x4] sm:$0xf]
    %v240 = vld [vmem:[%s9 + $0x8] sm:$0xf]
    %v241 = vld [vmem:[%s9 + $0xc] sm:$0xf]
    %v242 = vld [vmem:[%s9 + $0x10] sm:$0xf]
    %v243 = vld [vmem:[%s9 + $0x14] sm:$0xf]
    %v244 = vld [vmem:[%s9 + $0x18] sm:$0xf]
    %v245 = vld [vmem:[%s9 + $0x1c] sm:$0xf]
    %v246 = vld [vmem:[%s10] sm:$0x1]
    %v248 = vperm.slane %v246, 0
    %v258 = vunpack.c.l.b16 %v238
    %v259 = vunpack.c.l.b16 %v239
    %v260 = vunpack.c.l.b16 %v240
    %v261 = vunpack.c.l.b16 %v241
    %v262 = vunpack.c.l.b16 %v242
    %v263 = vunpack.c.l.b16 %v243
    %v264 = vunpack.c.l.b16 %v244
    %v265 = vunpack.c.l.b16 %v245
    %v266 = vpack.c.b16 %v259, %v258
    %v267 = vpack.c.b16 %v261, %v260
    %v268 = vpack.c.b16 %v263, %v262
    %v269 = vpack.c.b16 %v265, %v264
    %vm274 = vcmask 523264
    %v276 = vsel %vm274, %v237, 0
    %278 = vmatpush.bf16.msra.mxu0 0
    %279 = vmatpush.bf16.msra.mxu0 0
    %280 = vmatpush.bf16.msra.mxu0 0
    %281 = vmatpush.bf16.msra.mxu0 0
    %282 = vmatpush.bf16.msra.mxu0 %v269
    %283 = vmatpush.bf16.msra.mxu0 %v268
    %284 = vmatpush.bf16.msra.mxu0 %v267
    %285 = vmatpush.bf16.msra.mxu0 %v266
    %286 = vmatmul.bf16.gmra.mxu0 %v276
    %v287 = vpop.f32.mrf.mxu0
    %v288 = vadd.f32 %v248, %v287
    %v289 = vpop.f32.mrf.mxu0
    %290 = vdwg.mxu0
    %vm291 = vcmask 15360
    %292 = vst.msk [vmem:[%s11] sm:$0xff] %vm291, %v288
    // Predicated region
    $region62: #{tpu_custom_call.1} parent=1 // pred_check
      _
    $region63: #{tpu_custom_call.1} parent=1 // pred_check_branch
      %294 = sbr.rel (0) target = $region65
    $region64: #{tpu_custom_call.1} parent=1 // pred_region
      _
    $region65: #{tpu_custom_call.1} parent=1 // pred_fallthru
      _
    // Predicated region
    $region66: #{tpu_custom_call.1} parent=1 // pred_check
      _
    $region67: #{tpu_custom_call.1} parent=1 // pred_check_branch
      %296 = sbr.rel (0) target = $region69
    $region68: #{tpu_custom_call.1} parent=1 // pred_region
      _
    $region69: #{tpu_custom_call.1} parent=1 // pred_fallthru
      _
    %297 = vsyncpa [#allocation3], 1
    %298 = vsyncpa [#allocation5], 1
    %299 = vsyncpa [#allocation8], 1

</llo_original>
